<compile_context>
chip_gen: v7x
topology: tpu7x:2x2x1
jax: 0.10.0
libtpu: 0.0.40
codegen_flags: <defaults>
</compile_context>

<pallas_src>
import jax
import jax.numpy as jnp
from jax.experimental import pallas as pl
from jax.experimental.pallas import tpu as pltpu

NUM_TYPES = 21          # cfg['dataset']['node_encoder_num_types']
NUM_TYPES_PAD = 32      # pad contraction dim for clean sublane tiling
EMB_DIM = 64            # cfg['gt']['dim_hidden']
PACK = 4                # nodes packed per output row
ONE_HOT_K = PACK * NUM_TYPES_PAD   # 128 : contraction dim
ROW_WIDTH = PACK * EMB_DIM         # 256 : output lanes per packed row
MAX_TILE_ROWS = 2048    # packed rows per grid step (= 8192 nodes / step)


def _round_up(a, b):
    return ((a + b - 1) // b) * b


def _embedding_kernel(idx_ref, table_ref, out_ref):
    # idx_ref:   (R, 4)      int32   -- 4 node ids per packed row
    # table_ref: (128, 256)  float32 -- block-diagonal embedding table
    # out_ref:   (R, 256)    float32 -- 4 embeddings per packed row
    idx = idx_ref[...]                                                # (R, 4)
    col = jax.lax.broadcasted_iota(jnp.int32, idx.shape, 1)           # (R, 4)
    idx_off = idx + col * NUM_TYPES_PAD          # node p selects rows p*32 ..
    iota = jax.lax.broadcasted_iota(
        jnp.int32, (idx.shape[0], ONE_HOT_K), 1)                      # (R, 128)
    one_hot = ((iota == idx_off[:, 0:1]) |
               (iota == idx_off[:, 1:2]) |
               (iota == idx_off[:, 2:3]) |
               (iota == idx_off[:, 3:4])).astype(jnp.float32)         # (R, 128)
    out_ref[...] = jnp.dot(one_hot, table_ref[...],
                           preferred_element_type=jnp.float32)        # (R, 256)


def _build_table_wide(table):
    """(21, 64) table -> (128, 256) block-diagonal table. Built once per module."""
    table = jnp.asarray(table, jnp.float32)
    tw = jnp.zeros((ONE_HOT_K, ROW_WIDTH), jnp.float32)
    for p in range(PACK):
        tw = tw.at[p * NUM_TYPES_PAD:p * NUM_TYPES_PAD + NUM_TYPES,
                   p * EMB_DIM:(p + 1) * EMB_DIM].set(table)
    return tw


@jax.jit
def _forward(x, table_wide):
    n = x.shape[0]
    if n == 0:
        return jnp.zeros((0, EMB_DIM), jnp.float32)

    # Column-0 type ids; free reshape when x is already [N, 1] int32.
    if x.ndim == 1:
        idx = x.astype(jnp.int32)
    elif x.shape[1] == 1 and x.dtype == jnp.int32:
        idx = x.reshape(n)
    else:
        idx = x[:, 0].astype(jnp.int32)

    pad = (-n) % PACK
    if pad:
        idx = jnp.pad(idx, (0, pad))
    rows = idx.shape[0] // PACK
    idx2 = idx.reshape(rows, PACK)                 # free row-major reshape

    # Tile selection: big tiles to amortize per-step overhead, but keep >= 2
    # grid steps when possible so v7x's two TensorCores both get work.
    if rows <= 8:
        tile_rows = rows                           # single full-extent block
    else:
        tile_rows = min(MAX_TILE_ROWS, _round_up(pl.cdiv(rows, 2), 8))
    grid = (pl.cdiv(rows, tile_rows),)             # partial last block masked

    cost = pl.CostEstimate(
        flops=2 * rows * ONE_HOT_K * ROW_WIDTH,
        transcendentals=0,
        bytes_accessed=(rows * PACK * 4            # idx read
                        + rows * ROW_WIDTH * 4     # output write (dominant)
                        + ONE_HOT_K * ROW_WIDTH * 4))  # table (once)

    out = pl.pallas_call(
        _embedding_kernel,
        out_shape=jax.ShapeDtypeStruct((rows, ROW_WIDTH), jnp.float32),
        grid_spec=pltpu.PrefetchScalarGridSpec(
            num_scalar_prefetch=0,
            grid=grid,
            in_specs=[
                pl.BlockSpec((tile_rows, PACK), lambda i: (i, 0)),
                # constant-index block: fetched once, VMEM-resident across grid
                pl.BlockSpec((ONE_HOT_K, ROW_WIDTH), lambda i: (0, 0)),
            ],
            out_specs=pl.BlockSpec((tile_rows, ROW_WIDTH), lambda i: (i, 0)),
        ),
        compiler_params=pltpu.CompilerParams(
            dimension_semantics=("parallel",),
            vmem_limit_bytes=32 * 1024 * 1024),
        cost_estimate=cost,
    )(idx2, table_wide)

    out = out.reshape(rows * PACK, EMB_DIM)        # free row-major reshape
    if pad:
        # TODO(synk): consumers that accept a [round_up(N,4), 64] padded output
        # should skip this slice (it materializes a copy when N % 4 != 0).
        out = out[:n]
    return out
    # NB: unlike nn.Embedding, out-of-range type ids do not raise: ids 21..31
    # give a zero row and ids >= 32 alias into another packed node's block.


class TypeDictNodeEncoder:
    """JAX/Pallas port of the PyTorch TypeDictNodeEncoder forward pass."""

    def __init__(self, table):
        assert table.shape == (NUM_TYPES, EMB_DIM)
        # Block-diagonal table built ONCE here, not per forward call.
        self.table_wide = jax.device_put(_build_table_wide(table))

    def __call__(self, x):
        return _forward(x, self.table_wide)


if __name__ == "__main__":
    key = jax.random.PRNGKey(0)
    k_idx, k_emb = jax.random.split(key)

    # Deterministic "weights": nn.Embedding default init is N(0, 1).
    table = jax.random.normal(k_emb, (NUM_TYPES, EMB_DIM), dtype=jnp.float32)
    encoder = TypeDictNodeEncoder(table)

    # Example node features: [N, 1] int type ids (as in ZINC batch.x).
    #   N=200 -> multi-step grid + partial last block
    #   N=37  -> odd N (pack-pad + tail-slice path)
    #   N=24  -> small single-block path
    for n in (200, 37, 24):
        x = jax.random.randint(k_idx, (n, 1), 0, NUM_TYPES, dtype=jnp.int32)
        out = jax.block_until_ready(encoder(x))

        ref = table[x[:, 0]]          # plain JAX embedding lookup reference
        assert out.shape == (n, EMB_DIM), out.shape
        assert jnp.allclose(out, ref, atol=1e-6), float(jnp.abs(out - ref).max())

    print("KERNEL_OK")
</pallas_src>

<mosaic_0001>
module attributes {stable_mosaic.version = 11 : i64} {
  func.func @_embedding_kernel(%arg0: i32, %arg1: memref<32x4xi32, #tpu.memory_space<vmem>>, %arg2: memref<128x256xf32, #tpu.memory_space<vmem>>, %arg3: memref<32x256xf32, #tpu.memory_space<vmem>>) attributes {dimension_semantics = [#tpu.dimension_semantics<parallel>], iteration_bounds = array<i64: 2>, scalar_prefetch = 0 : i64, scratch_operands = 0 : i64, tpu.core_type = #tpu.core_type<tc>, window_params = [{transform_indices = @transform_0, window_bounds = array<i64: 32, 4>}, {pipeline_mode = #tpu.pipeline_mode<synchronous>, transform_indices = @transform_1, window_bounds = array<i64: 128, 256>}, {transform_indices = @transform_2, window_bounds = array<i64: 32, 256>}]} {
    %c0 = arith.constant 0 : index
    %c0_0 = arith.constant 0 : index
    %0 = vector.load %arg1[%c0, %c0_0] : memref<32x4xi32, #tpu.memory_space<vmem>>, vector<32x4xi32>
    %1 = tpu.iota {dimensions = array<i32: 1>} : vector<32x4xi32>
    %c32_i32 = arith.constant 32 : i32
    %2 = vector.broadcast %c32_i32 : i32 to vector<32x4xi32>
    %3 = arith.muli %1, %2 : vector<32x4xi32>
    %4 = arith.addi %0, %3 : vector<32x4xi32>
    %5 = tpu.iota {dimensions = array<i32: 1>} : vector<32x128xi32>
    %6 = vector.extract_strided_slice %4 {offsets = [0, 0], sizes = [32, 1], strides = [1, 1]} : vector<32x4xi32> to vector<32x1xi32>
    %7 = vector.broadcast %6 : vector<32x1xi32> to vector<32x128xi32>
    %8 = arith.cmpi eq, %5, %7 : vector<32x128xi32>
    %9 = vector.extract_strided_slice %4 {offsets = [0, 1], sizes = [32, 1], strides = [1, 1]} : vector<32x4xi32> to vector<32x1xi32>
    %10 = vector.broadcast %9 : vector<32x1xi32> to vector<32x128xi32>
    %11 = arith.cmpi eq, %5, %10 : vector<32x128xi32>
    %12 = arith.ori %8, %11 : vector<32x128xi1>
    %13 = vector.extract_strided_slice %4 {offsets = [0, 2], sizes = [32, 1], strides = [1, 1]} : vector<32x4xi32> to vector<32x1xi32>
    %14 = vector.broadcast %13 : vector<32x1xi32> to vector<32x128xi32>
    %15 = arith.cmpi eq, %5, %14 : vector<32x128xi32>
    %16 = arith.ori %12, %15 : vector<32x128xi1>
    %17 = vector.extract_strided_slice %4 {offsets = [0, 3], sizes = [32, 1], strides = [1, 1]} : vector<32x4xi32> to vector<32x1xi32>
    %18 = vector.broadcast %17 : vector<32x1xi32> to vector<32x128xi32>
    %19 = arith.cmpi eq, %5, %18 : vector<32x128xi32>
    %20 = arith.ori %16, %19 : vector<32x128xi1>
    %21 = arith.extui %20 : vector<32x128xi1> to vector<32x128xi32>
    %22 = arith.sitofp %21 : vector<32x128xi32> to vector<32x128xf32>
    %c0_1 = arith.constant 0 : index
    %c0_2 = arith.constant 0 : index
    %23 = vector.load %arg2[%c0_1, %c0_2] : memref<128x256xf32, #tpu.memory_space<vmem>>, vector<128x256xf32>
    %cst = arith.constant dense<0.000000e+00> : vector<32x256xf32>
    %24 = tpu.matmul %22, %23, %cst {dimension_numbers = #tpu.dot_dimension_numbers<[1], [0], [0], [1], [0, 0, 1, 1], [], []>} : vector<32x128xf32>, vector<128x256xf32>, vector<32x256xf32> -> vector<32x256xf32>
    %c0_3 = arith.constant 0 : index
    %c0_4 = arith.constant 0 : index
    %25 = vector.load %arg3[%c0_3, %c0_4] : memref<32x256xf32, #tpu.memory_space<vmem>>, vector<32x256xf32>
    tpu.vector_store %arg3[%c0_3, %c0_4], %24 {strides = array<i32>} : memref<32x256xf32, #tpu.memory_space<vmem>>, vector<32x256xf32>,
    return
  }
  func.func @transform_0(%arg0: i32) -> (i32, i32) {
    %c0_i32 = arith.constant 0 : i32
    %c0_i32_0 = arith.constant 0 : i32
    return %arg0, %c0_i32 : i32, i32
  }
  func.func @transform_1(%arg0: i32) -> (i32, i32) {
    %c0_i32 = arith.constant 0 : i32
    %c0_i32_0 = arith.constant 0 : i32
    %c0_i32_1 = arith.constant 0 : i32
    return %c0_i32, %c0_i32_0 : i32, i32
  }
  func.func @transform_2(%arg0: i32) -> (i32, i32) {
    %c0_i32 = arith.constant 0 : i32
    %c0_i32_0 = arith.constant 0 : i32
    return %arg0, %c0_i32 : i32, i32
  }
}

</mosaic_0001>

<llo_original>
// kernel: _forward.1
$region0: #{_forward.1}
  #allocation0 [shape = 'u32[]', space=smem, size = 0x4, offset = 0x4, fixed_abs, tag = 'smem constant byte address 0x4 - core index']
  #allocation1 [shape = 'u32[144,128]{1,0:T(1,128)}', space=vmem, size = 0x12000, scoped, tag = 'internal scratch']
  %s0 = inlined_call_operand.vmem [shape: s32[50,4], index: 0, kind: input, shape index: {}]
  %s1 = inlined_call_operand.hbm [shape: f32[128,256], index: 1, kind: input, shape index: {}]
  %s2 = inlined_call_operand.vmem [shape: f32[50,256], index: 2, kind: output, shape index: {}]
  %s3 = sld [smem:[#allocation0]]
  $region71: #{_forward.1} parent=0
    _
  %s5 = ssub.s32 1, %s3
  %s6 = scalar_select 0, %s5, %s3
  $region1: #{_forward.1} parent=0
    #allocation2 [shape = 'u8[131072]{0}', space=vmem, size = 0x20000, scoped, tag = 'input window, operand 1, single buffered']
    #allocation3 [shape = 's32[2]{0}', space=sflag, size = 0x8, scoped, tag = 'scoped memory for _forward.1']
    #allocation4 [shape = 'u8[65536]{0}', space=vmem, size = 0x10000, scoped, tag = 'output window, operand 0']
    %7 = vsyncpa [#allocation3], 0
    loop: start=0, step=1, limit=4
    $region2: #{_forward.1} parent=1 // loop_pre_header
      _
    $region3: #{_forward.1} parent=1 // loop_header
      %s9 = sphi 0, %s13
      %p10 = scmp.ge.s32.totalorder %s9, 4
      %s19 = sphi 0, %s21
      %s22 = sphi 0, %s19
      %s23 = sphi 0, %s22
      %s39 = sphi 0, %s23
      %s43 = sphi 0, %s43
      %s45 = sphi 0, %s43
      %s46 = sphi 0, %s45
      %s60 = sphi 0, %s46
      %s66 = sphi 0, %s68
      %s69 = sphi 0, %s66
      %s70 = sphi 0, %s69
      %s86 = sphi 0, %s70
    $region4: #{_forward.1} parent=1 // loop_header_branch
      %12 = sbr.rel (%p10) target = $region8
    $region5: #{_forward.1} parent=1 // loop_body
      %s14 = ssub.s32 %s9, 1
      %s15 = ssub.s32 %s9, 2
      %s16 = sadd.s32 %s9, 1
      %s17 = ssub.s32 %s9, %s16
      %p18 = scmp.eq.s32.totalorder %s17, 0
      %s20 = sadd.s32 %s19, 1
      %s21 = scalar_select %p18, %s19, %s20
      %p24 = pneg %p18
      %p25 = scmp.eq.s32.totalorder %s9, 1
      %p26 = por %p24, %p25
      %p27 = scmp.ne.s32.totalorder %s19, %s22
      %p28 = scmp.eq.s32.totalorder %s9, 0
      %p29 = por %p27, %p28
      %p30 = scmp.ne.s32.totalorder %s19, %s22
      %p31 = scmp.eq.s32.totalorder %s14, 1
      %p32 = por %p30, %p31
      %p33 = scmp.ne.s32.totalorder %s22, %s23
      %p34 = scmp.eq.s32.totalorder %s14, 0
      %p35 = por %p33, %p34
      %p36 = scmp.ne.s32.totalorder %s22, %s23
      %p37 = scmp.eq.s32.totalorder %s15, 1
      %p38 = por %p36, %p37
      %p40 = scmp.ne.s32.totalorder %s23, %s39
      %p41 = scmp.eq.s32.totalorder %s15, 0
      %p42 = por %p40, %p41
      %s44 = sadd.s32 %s43, 1
      %p47 = scmp.eq.s32.totalorder %s9, 1
      %p48 = scmp.ne.s32.totalorder %s43, %s45
      %p49 = scmp.eq.s32.totalorder %s9, 0
      %p50 = por %p48, %p49
      %p51 = scmp.ne.s32.totalorder %s43, %s45
      %p52 = scmp.eq.s32.totalorder %s14, 1
      %p53 = por %p51, %p52
      %p54 = scmp.ne.s32.totalorder %s45, %s46
      %p55 = scmp.eq.s32.totalorder %s14, 0
      %p56 = por %p54, %p55
      %p57 = scmp.ne.s32.totalorder %s45, %s46
      %p58 = scmp.eq.s32.totalorder %s15, 1
      %p59 = por %p57, %p58
      %p61 = scmp.ne.s32.totalorder %s46, %s60
      %p62 = scmp.eq.s32.totalorder %s15, 0
      %p63 = por %p61, %p62
      %s64 = ssub.s32 %s9, %s16
      %p65 = scmp.eq.s32.totalorder %s64, 0
      %s67 = sadd.s32 %s66, 1
      %s68 = scalar_select %p65, %s66, %s67
      %p71 = pneg %p65
      %p72 = scmp.eq.s32.totalorder %s9, 1
      %p73 = por %p71, %p72
      %p74 = scmp.ne.s32.totalorder %s66, %s69
      %p75 = scmp.eq.s32.totalorder %s9, 0
      %p76 = por %p74, %p75
      %p77 = scmp.ne.s32.totalorder %s66, %s69
      %p78 = scmp.eq.s32.totalorder %s14, 1
      %p79 = por %p77, %p78
      %p80 = scmp.ne.s32.totalorder %s69, %s70
      %p81 = scmp.eq.s32.totalorder %s14, 0
      %p82 = por %p80, %p81
      %p83 = scmp.ne.s32.totalorder %s69, %s70
      %p84 = scmp.eq.s32.totalorder %s15, 1
      %p85 = por %p83, %p84
      %p87 = scmp.ne.s32.totalorder %s70, %s86
      %p88 = scmp.eq.s32.totalorder %s15, 0
      %p89 = por %p87, %p88
      %p90 = scmp.le.s32.totalorder 1, %s9
      %p91 = scmp.lt.s32.totalorder %s9, 3
      %p92 = pnand %p90, %p91
      %p93 = pneg %p92
      // Predicated region
      $region9: #{_forward.1} parent=5 // pred_check
        _
      $region10: #{_forward.1} parent=5 // pred_check_branch
        %95 = sbr.rel (%p92) target = $region12
      $region11: #{_forward.1} parent=5 // pred_region
        %s96 = ssub.s32 %s9, 1
        // Predicated region
        $region13: #{_forward.1} parent=11 // pred_check
          %p97 = pneg %p56
        $region14: #{_forward.1} parent=11 // pred_check_branch
          %99 = sbr.rel (%p97) target = $region16
        $region15: #{_forward.1} parent=11 // pred_region
          %s101 = ssub.s32 4096, 4096
          %102 = vsyncadd [#allocation3], %s101
          %s103 = sshll.u32 [#allocation2], 4
          %s104 = int_to_ptr.vmem [resolvable:$true] %s103
          %109 = dma.hbm_to_vmem [thread:$0]  %s1, 4096, %s104, [#allocation3], 256, 256, 16
        $region16: #{_forward.1} parent=11 // pred_fallthru
          _
      $region12: #{_forward.1} parent=5 // pred_fallthru
        _
      %p110 = scmp.lt.s32.totalorder %s9, 2
      // Predicated region
      $region17: #{_forward.1} parent=5 // pred_check
        %p111 = pneg %p110
      $region18: #{_forward.1} parent=5 // pred_check_branch
        %113 = sbr.rel (%p111) target = $region20
      $region19: #{_forward.1} parent=5 // pred_region
        // Predicated region
        $region21: #{_forward.1} parent=19 // pred_check
          %p114 = pneg %p29
        $region22: #{_forward.1} parent=19 // pred_check_branch
          %116 = sbr.rel (%p114) target = $region24
        $region23: #{_forward.1} parent=19 // pred_region
          %s117 = smul.u32 4, %s9
          %s118 = ssub.s32 7, %s117
          %p119 = scmp.lt.s32.totalorder %s118, 4
          %s120 = scalar_select %p119, %s118, 4
          %s121 = smul.u32 128, %s120
          %p122 = scmp.lt.s32.totalorder %s117, 6
          %s123 = scalar_select %p122, %s117, 6
          %s124 = smul.addr %s123, 8
          %s125 = scalar_lea.vmem %s0, %s124
          %s126 = smul.u32 4, %s9
          %s127 = ssub.s32 7, %s126
          %p128 = scmp.lt.s32.totalorder %s127, 4
          %s129 = scalar_select %p128, %s127, 4
          %s130 = smul.u32 128, %s129
        $region24: #{_forward.1} parent=19 // pred_fallthru
          _
      $region20: #{_forward.1} parent=5 // pred_fallthru
        _
      %p131 = scmp.le.s32.totalorder 1, %s9
      %p132 = scmp.lt.s32.totalorder %s9, 3
      %p133 = pnand %p131, %p132
      %p134 = pneg %p133
      // Predicated region
      $region25: #{_forward.1} parent=5 // pred_check
        _
      $region26: #{_forward.1} parent=5 // pred_check_branch
        %136 = sbr.rel (%p133) target = $region28
      $region27: #{_forward.1} parent=5 // pred_region
        %s137 = ssub.s32 %s9, 1
        // Predicated region
        $region29: #{_forward.1} parent=27 // pred_check
          %p138 = pneg %p56
        $region30: #{_forward.1} parent=27 // pred_check_branch
          %140 = sbr.rel (%p138) target = $region32
        $region31: #{_forward.1} parent=27 // pred_region
          %141 = dma.done [#allocation3], 4096
        $region32: #{_forward.1} parent=27 // pred_fallthru
          _
        %s142 = smul.u32 4, %s14
        %s143 = ssub.s32 7, %s142
        %p144 = scmp.lt.s32.totalorder %s143, 4
        %s145 = scalar_select %p144, %s143, 4
        %s146 = smul.u32 128, %s145
        %p147 = scmp.lt.s32.totalorder %s142, 6
        %s148 = scalar_select %p147, %s142, 6
        %s149 = smul.addr %s148, 8
        %s150 = scalar_lea.vmem %s0, %s149
        %p151 = pneg %p35
        %p152 = pneg %p32
        %p153 = pneg %p56
        %p154 = pneg %p53
        %p155 = pneg %p82
        %p156 = pneg %p79
        %s157 = sand.u32 %s69, 1
        %s158 = sand.u32 %s69, 1
        %s159 = smul.addr %s158, 64
        %s160 = scalar_lea.vmem [#allocation4], %s159
        %s161 = smul.u32 4, %s14
        %s162 = ssub.s32 7, %s161
        %p163 = scmp.lt.s32.totalorder %s162, 4
        %s164 = scalar_select %p163, %s162, 4
        %s165 = smul.u32 128, %s164
        %p166 = scmp.lt.s32.totalorder %s161, 6
        %s167 = scalar_select %p166, %s161, 6
        %s168 = smul.addr %s167, 8
        %s169 = scalar_lea.vmem %s0, %s168
        %s170 = smul.u32 4, %s14
        %s171 = ssub.s32 7, %s170
        %p172 = scmp.lt.s32.totalorder %s171, 4
        %s173 = scalar_select %p172, %s171, 4
        %s174 = smul.u32 128, %s173
        %s175 = smul.u32 4, %s14
        %s176 = ssub.s32 7, %s175
        %p177 = scmp.lt.s32.totalorder %s176, 4
        %s178 = scalar_select %p177, %s176, 4
        %s179 = smul.u32 128, %s178
        %s180 = smul.u32 %s179, 2
        %v181 = vld [vmem:[%s169] sm:$0xff]
        %v182 = vld [vmem:[%s169 + $0x8] sm:$0xff]
        %v183 = vld [vmem:[%s169 + $0x10] sm:$0xff]
        %v184 = vld [vmem:[%s169 + $0x18] sm:$0xff]
        %v185 = vlaneseq
        %v186 = vand.u32 %v185, 127
        %v187 = vmul.u32 %v186, 32
        %v188 = vadd.s32 %v181, %v187
        %v189 = vadd.s32 %v182, %v187
        %v190 = vadd.s32 %v183, %v187
        %v191 = vadd.s32 %v184, %v187
        %192 = vset.pattern.permute.xlu0 0
        %193 = vperm.xlu0 %192, %v188
        %v194 = vpop.permute.xlu0 %193
        %195 = vset.pattern.permute.xlu0 0
        %196 = vperm.xlu0 %195, %v189
        %v197 = vpop.permute.xlu0 %196
        %198 = vset.pattern.permute.xlu0 0
        %199 = vperm.xlu0 %198, %v190
        %v200 = vpop.permute.xlu0 %199
        %201 = vset.pattern.permute.xlu0 0
        %202 = vperm.xlu0 %201, %v191
        %v203 = vpop.permute.xlu0 %202
        %vm204 = vcmp.eq.s32.totalorder %v186, %v194
        %vm205 = vcmp.eq.s32.totalorder %v186, %v197
        %vm206 = vcmp.eq.s32.totalorder %v186, %v200
        %vm207 = vcmp.eq.s32.totalorder %v186, %v203
        %208 = vset.pattern.permute.xlu0 1
        %209 = vperm.xlu0 %208, %v188
        %v210 = vpop.permute.xlu0 %209
        %211 = vset.pattern.permute.xlu0 1
        %212 = vperm.xlu0 %211, %v189
        %v213 = vpop.permute.xlu0 %212
        %214 = vset.pattern.permute.xlu0 1
        %215 = vperm.xlu0 %214, %v190
        %v216 = vpop.permute.xlu0 %215
        %217 = vset.pattern.permute.xlu0 1
        %218 = vperm.xlu0 %217, %v191
        %v219 = vpop.permute.xlu0 %218
        %vm220 = vcmp.eq.s32.totalorder %v186, %v210
        %vm221 = vcmp.eq.s32.totalorder %v186, %v213
        %vm222 = vcmp.eq.s32.totalorder %v186, %v216
        %vm223 = vcmp.eq.s32.totalorder %v186, %v219
        %vm224 = vmor %vm204, %vm220
        %vm225 = vmor %vm205, %vm221
        %vm226 = vmor %vm206, %vm222
        %vm227 = vmor %vm207, %vm223
        %228 = vset.pattern.permute.xlu0 2
        %229 = vperm.xlu0 %228, %v188
        %v230 = vpop.permute.xlu0 %229
        %231 = vset.pattern.permute.xlu0 2
        %232 = vperm.xlu0 %231, %v189
        %v233 = vpop.permute.xlu0 %232
        %234 = vset.pattern.permute.xlu0 2
        %235 = vperm.xlu0 %234, %v190
        %v236 = vpop.permute.xlu0 %235
        %237 = vset.pattern.permute.xlu0 2
        %238 = vperm.xlu0 %237, %v191
        %v239 = vpop.permute.xlu0 %238
        %vm240 = vcmp.eq.s32.totalorder %v186, %v230
        %vm241 = vcmp.eq.s32.totalorder %v186, %v233
        %vm242 = vcmp.eq.s32.totalorder %v186, %v236
        %vm243 = vcmp.eq.s32.totalorder %v186, %v239
        %vm244 = vmor %vm224, %vm240
        %vm245 = vmor %vm225, %vm241
        %vm246 = vmor %vm226, %vm242
        %vm247 = vmor %vm227, %vm243
        %248 = vset.pattern.permute.xlu0 3
        %249 = vperm.xlu0 %248, %v188
        %v250 = vpop.permute.xlu0 %249
        %251 = vset.pattern.permute.xlu0 3
        %252 = vperm.xlu0 %251, %v189
        %v253 = vpop.permute.xlu0 %252
        %254 = vset.pattern.permute.xlu0 3
        %255 = vperm.xlu0 %254, %v190
        %v256 = vpop.permute.xlu0 %255
        %257 = vset.pattern.permute.xlu0 3
        %258 = vperm.xlu0 %257, %v191
        %v259 = vpop.permute.xlu0 %258
        %vm260 = vcmp.eq.s32.totalorder %v186, %v250
        %vm261 = vcmp.eq.s32.totalorder %v186, %v253
        %vm262 = vcmp.eq.s32.totalorder %v186, %v256
        %vm263 = vcmp.eq.s32.totalorder %v186, %v259
        %vm264 = vmor %vm244, %vm260
        %vm265 = vmor %vm245, %vm261
        %vm266 = vmor %vm246, %vm262
        %vm267 = vmor %vm247, %vm263
        %v268 = vsel %vm264, 1, 0
        %v269 = vsel %vm265, 1, 0
        %v270 = vsel %vm266, 1, 0
        %v271 = vsel %vm267, 1, 0
        %v272 = vcvt.s32.f32 %v268
        %v273 = vcvt.s32.f32 %v269
        %v274 = vcvt.s32.f32 %v270
        %v275 = vcvt.s32.f32 %v271
        %v276 = vld [vmem:[#allocation2] sm:$0xff]
        %v277 = vld [vmem:[#allocation2 + $0x8] sm:$0xff]
        %v278 = vld [vmem:[#allocation2 + $0x10] sm:$0xff]
        %v279 = vld [vmem:[#allocation2 + $0x18] sm:$0xff]
        %v280 = vld [vmem:[#allocation2 + $0x20] sm:$0xff]
        %v281 = vld [vmem:[#allocation2 + $0x28] sm:$0xff]
        %v282 = vld [vmem:[#allocation2 + $0x30] sm:$0xff]
        %v283 = vld [vmem:[#allocation2 + $0x38] sm:$0xff]
        %v284 = vld [vmem:[#allocation2 + $0x40] sm:$0xff]
        %v285 = vld [vmem:[#allocation2 + $0x48] sm:$0xff]
        %v286 = vld [vmem:[#allocation2 + $0x50] sm:$0xff]
        %v287 = vld [vmem:[#allocation2 + $0x58] sm:$0xff]
        %v288 = vld [vmem:[#allocation2 + $0x60] sm:$0xff]
        %v289 = vld [vmem:[#allocation2 + $0x68] sm:$0xff]
        %v290 = vld [vmem:[#allocation2 + $0x70] sm:$0xff]
        %v291 = vld [vmem:[#allocation2 + $0x78] sm:$0xff]
        %v292 = vld [vmem:[#allocation2 + $0x80] sm:$0xff]
        %v293 = vld [vmem:[#allocation2 + $0x88] sm:$0xff]
        %v294 = vld [vmem:[#allocation2 + $0x90] sm:$0xff]
        %v295 = vld [vmem:[#allocation2 + $0x98] sm:$0xff]
        %v296 = vld [vmem:[#allocation2 + $0xa0] sm:$0xff]
        %v297 = vld [vmem:[#allocation2 + $0xa8] sm:$0xff]
        %v298 = vld [vmem:[#allocation2 + $0xb0] sm:$0xff]
        %v299 = vld [vmem:[#allocation2 + $0xb8] sm:$0xff]
        %v300 = vld [vmem:[#allocation2 + $0xc0] sm:$0xff]
        %v301 = vld [vmem:[#allocation2 + $0xc8] sm:$0xff]
        %v302 = vld [vmem:[#allocation2 + $0xd0] sm:$0xff]
        %v303 = vld [vmem:[#allocation2 + $0xd8] sm:$0xff]
        %v304 = vld [vmem:[#allocation2 + $0xe0] sm:$0xff]
        %v305 = vld [vmem:[#allocation2 + $0xe8] sm:$0xff]
        %v306 = vld [vmem:[#allocation2 + $0xf0] sm:$0xff]
        %v307 = vld [vmem:[#allocation2 + $0xf8] sm:$0xff]
        %308 = vmatprep.subr.mxu0 %v277
        %309 = vmatpush1.msra.mxu0 %v276
        %310 = vmatprep.subr.mxu0 %v279
        %311 = vmatpush1.msra.mxu0 %v278
        %312 = vmatprep.subr.mxu0 %v281
        %313 = vmatpush1.msra.mxu0 %v280
        %314 = vmatprep.subr.mxu0 %v283
        %315 = vmatpush1.msra.mxu0 %v282
        %316 = vmatprep.subr.mxu0 %v285
        %317 = vmatpush1.msra.mxu0 %v284
        %318 = vmatprep.subr.mxu0 %v287
        %319 = vmatpush1.msra.mxu0 %v286
        %320 = vmatprep.subr.mxu0 %v289
        %321 = vmatpush1.msra.mxu0 %v288
        %322 = vmatprep.subr.mxu0 %v291
        %323 = vmatpush1.msra.mxu0 %v290
        %324 = vmatprep.subr.mxu0 %v293
        %325 = vmatpush1.msra.mxu0 %v292
        %326 = vmatprep.subr.mxu0 %v295
        %327 = vmatpush1.msra.mxu0 %v294
        %328 = vmatprep.subr.mxu0 %v297
        %329 = vmatpush1.msra.mxu0 %v296
        %330 = vmatprep.subr.mxu0 %v299
        %331 = vmatpush1.msra.mxu0 %v298
        %332 = vmatprep.subr.mxu0 %v301
        %333 = vmatpush1.msra.mxu0 %v300
        %334 = vmatprep.subr.mxu0 %v303
        %335 = vmatpush1.msra.mxu0 %v302
        %336 = vmatprep.subr.mxu0 %v305
        %337 = vmatpush1.msra.mxu0 %v304
        %338 = vmatprep.subr.mxu0 %v307
        %339 = vmatpush1.msra.mxu0 %v306
        %340 = vmatprep.subr.mxu0 0.0
        %341 = vmatpush1.msra.mxu0 0.0
        %342 = vmatprep.subr.mxu0 0.0
        %343 = vmatpush1.msra.mxu0 0.0
        %344 = vmatprep.subr.mxu0 0.0
        %345 = vmatpush1.msra.mxu0 0.0
        %346 = vmatprep.subr.mxu0 0.0
        %347 = vmatpush1.msra.mxu0 0.0
        %348 = vmatprep.subr.mxu0 0.0
        %349 = vmatpush1.msra.mxu0 0.0
        %350 = vmatprep.subr.mxu0 0.0
        %351 = vmatpush1.msra.mxu0 0.0
        %352 = vmatprep.subr.mxu0 0.0
        %353 = vmatpush1.msra.mxu0 0.0
        %354 = vmatprep.subr.mxu0 0.0
        %355 = vmatpush1.msra.mxu0 0.0
        %356 = vmatprep.subr.mxu0 0.0
        %357 = vmatpush1.msra.mxu0 0.0
        %358 = vmatprep.subr.mxu0 0.0
        %359 = vmatpush1.msra.mxu0 0.0
        %360 = vmatprep.subr.mxu0 0.0
        %361 = vmatpush1.msra.mxu0 0.0
        %362 = vmatprep.subr.mxu0 0.0
        %363 = vmatpush1.msra.mxu0 0.0
        %364 = vmatprep.subr.mxu0 0.0
        %365 = vmatpush1.msra.mxu0 0.0
        %366 = vmatprep.subr.mxu0 0.0
        %367 = vmatpush1.msra.mxu0 0.0
        %368 = vmatprep.subr.mxu0 0.0
        %369 = vmatpush1.msra.mxu0 0.0
        %370 = vmatprep.subr.mxu0 0.0
        %371 = vmatpush1.msra.mxu0 0.0
        %372 = vmatprep.mubr.f32.mxu0 0.0
        %373 = vmatmul.mubr.f32.gmra.mrb[0].mxu0 %v272
        %v374 = vpop.f32.mrb[0].mxu0
        %v375 = vadd.f32 0.0, %v374
        %v376 = vpop.f32.mrb[0].mxu0
        %v377 = vadd.f32 0.0, %v376
        %378 = vmatprep.mubr.f32.mxu0 0.0
        %379 = vmatmul.mubr.f32.gmra.mrb[0].mxu0 %v273
        %v380 = vpop.f32.mrb[0].mxu0
        %v381 = vadd.f32 0.0, %v380
        %v382 = vpop.f32.mrb[0].mxu0
        %v383 = vadd.f32 0.0, %v382
        %384 = vmatprep.mubr.f32.mxu0 0.0
        %385 = vmatmul.mubr.f32.gmra.mrb[0].mxu0 %v274
        %v386 = vpop.f32.mrb[0].mxu0
        %v387 = vadd.f32 0.0, %v386
        %v388 = vpop.f32.mrb[0].mxu0
        %v389 = vadd.f32 0.0, %v388
        %390 = vmatprep.mubr.f32.mxu0 0.0
        %391 = vmatmul.mubr.f32.gmra.mrb[0].mxu0 %v275
        %v392 = vpop.f32.mrb[0].mxu0
        %v393 = vadd.f32 0.0, %v392
        %v394 = vpop.f32.mrb[0].mxu0
        %v395 = vadd.f32 0.0, %v394
        %396 = vdwg.mxu0
        %397 = vst [vmem:[%s160] sm:$0xff] %v375
        %398 = vst [vmem:[%s160 + $0x8] sm:$0xff] %v377
        %399 = vst [vmem:[%s160 + $0x10] sm:$0xff] %v381
        %400 = vst [vmem:[%s160 + $0x18] sm:$0xff] %v383
        %401 = vst [vmem:[%s160 + $0x20] sm:$0xff] %v387
        %402 = vst [vmem:[%s160 + $0x28] sm:$0xff] %v389
        %403 = vst [vmem:[%s160 + $0x30] sm:$0xff] %v393
        %404 = vst [vmem:[%s160 + $0x38] sm:$0xff] %v395
        %s405 = sand.u32 %s69, 1
        %s406 = sand.u32 %s69, 1
        %s407 = smul.addr %s406, 64
        %s408 = scalar_lea.vmem [#allocation4], %s407
        // Predicated region
        $region33: #{_forward.1} parent=27 // pred_check
          %p409 = pneg %p79
        $region34: #{_forward.1} parent=27 // pred_check_branch
          %411 = sbr.rel (%p409) target = $region36
        $region35: #{_forward.1} parent=27 // pred_region
          %s412 = smul.u32 4, %s14
          %s413 = ssub.s32 7, %s412
          %p414 = scmp.lt.s32.totalorder %s413, 4
          %s415 = scalar_select %p414, %s413, 4
          %s416 = smul.u32 128, %s415
          %s417 = smul.u32 %s416, 2
          %p418 = scmp.ne.s32.totalorder 0, %s417
          %s419 = smul.addr %s412, 2
          %s420 = smul.addr %s419, 8
          %s421 = scalar_lea.vmem %s2, %s420
          // Predicated region
          $region37: #{_forward.1} parent=35 // pred_check
            %p422 = pneg %p418
          $region38: #{_forward.1} parent=35 // pred_check_branch
            %424 = sbr.rel (%p422) target = $region40
          $region39: #{_forward.1} parent=35 // pred_region
            // Predicated region
            $region41: #{_forward.1} parent=39 // pred_check
              _
            $region42: #{_forward.1} parent=39 // pred_check_branch
              %426 = sbr.rel (0) target = $region44
            $region43: #{_forward.1} parent=39 // pred_region
              %s427 = sshrl.u32 %s415, 2
              // While loop
              $region45: #{_forward.1} parent=43 // loop_pre_header
                _
              $region46: #{_forward.1} parent=43 // loop_header
                %s429 = sphi 0, %s431
                %p430 = scmp.ge.s32.totalorder %s429, %s427
                %s434 = sphi 0, %s455
                %s435 = sphi %s408, %s458
                %s436 = sphi %s421, %s459
              $region47: #{_forward.1} parent=43 // loop_header_branch
                %433 = sbr.rel (%p430) target = $region51
              $region48: #{_forward.1} parent=43 // loop_body
                %v437 = vld [vmem:[%s435] sm:$0xff]
                %438 = vst [vmem:[%s436] sm:$0xff] %v437
                %v439 = vld [vmem:[%s435 + $0x10] sm:$0xff]
                %440 = vst [vmem:[%s436 + $0x10] sm:$0xff] %v439
                %v441 = vld [vmem:[%s435 + $0x20] sm:$0xff]
                %442 = vst [vmem:[%s436 + $0x20] sm:$0xff] %v441
                %v443 = vld [vmem:[%s435 + $0x30] sm:$0xff]
                %444 = vst [vmem:[%s436 + $0x30] sm:$0xff] %v443
                %v445 = vld [vmem:[%s435 + $0x8] sm:$0xff]
                %446 = vst [vmem:[%s436 + $0x8] sm:$0xff] %v445
                %v447 = vld [vmem:[%s435 + $0x18] sm:$0xff]
                %448 = vst [vmem:[%s436 + $0x18] sm:$0xff] %v447
                %v449 = vld [vmem:[%s435 + $0x28] sm:$0xff]
                %450 = vst [vmem:[%s436 + $0x28] sm:$0xff] %v449
                %v451 = vld [vmem:[%s435 + $0x38] sm:$0xff]
                %452 = vst [vmem:[%s436 + $0x38] sm:$0xff] %v451
                %s453 = sadd.s32 1, %s434
                %p454 = scmp.ge.s32.totalorder %s453, %s427
                %s455 = scalar_select %p454, 0, %s453
                %s456 = smul.u32 %s455, 64
                %s457 = smul.u32 %s455, 64
                %s458 = scalar_lea.vmem %s408, %s456 [#allocation4]
                %s459 = scalar_lea.vmem %s421, %s457
              $region49: #{_forward.1} parent=43 // loop_footer
                %s431 = sadd.s32 %s429, 1
              $region50: #{_forward.1} parent=43 // loop_footer_branch
                %428 = sbr.rel target = $region46
              $region51: #{_forward.1} parent=43 // loop_exit
                _
              %s460 = sshrl.u32 %s415, 2
              %s461 = sand.u32 %s415, 3
              %s462 = smul.u32 %s460, 4
              %s463 = smul.u32 16, %s462
              %s464 = scalar_lea.vmem %s408, %s463 [#allocation4]
              %s465 = smul.u32 16, %s462
              %s466 = scalar_lea.vmem %s421, %s465
              // While loop
              $region52: #{_forward.1} parent=43 // loop_pre_header
                _
              $region53: #{_forward.1} parent=43 // loop_header
                %s468 = sphi 0, %s470
                %p469 = scmp.ge.s32.totalorder %s468, %s461
                %s473 = sphi 0, %s482
                %s474 = sphi %s464, %s485
                %s475 = sphi %s466, %s486
              $region54: #{_forward.1} parent=43 // loop_header_branch
                %472 = sbr.rel (%p469) target = $region58
              $region55: #{_forward.1} parent=43 // loop_body
                %v476 = vld [vmem:[%s474] sm:$0xff]
                %477 = vst [vmem:[%s475] sm:$0xff] %v476
                %v478 = vld [vmem:[%s474 + $0x8] sm:$0xff]
                %479 = vst [vmem:[%s475 + $0x8] sm:$0xff] %v478
                %s480 = sadd.s32 1, %s473
                %p481 = scmp.ge.s32.totalorder %s480, %s461
                %s482 = scalar_select %p481, 0, %s480
                %s483 = smul.u32 %s482, 16
                %s484 = smul.u32 %s482, 16
                %s485 = scalar_lea.vmem %s464, %s483 [#allocation4]
                %s486 = scalar_lea.vmem %s466, %s484
              $region56: #{_forward.1} parent=43 // loop_footer
                %s470 = sadd.s32 %s468, 1
              $region57: #{_forward.1} parent=43 // loop_footer_branch
                %467 = sbr.rel target = $region53
              $region58: #{_forward.1} parent=43 // loop_exit
                _
            $region44: #{_forward.1} parent=39 // pred_fallthru
              _
            // Predicated region
            $region59: #{_forward.1} parent=39 // pred_check
              _
            $region60: #{_forward.1} parent=39 // pred_check_branch
              %488 = sbr.rel target = $region62
            $region61: #{_forward.1} parent=39 // pred_region
              _
            $region62: #{_forward.1} parent=39 // pred_fallthru
              _
          $region40: #{_forward.1} parent=35 // pred_fallthru
            _
          %489 = vnop
        $region36: #{_forward.1} parent=27 // pred_fallthru
          _
      $region28: #{_forward.1} parent=5 // pred_fallthru
        _
      %p490 = scmp.le.s32.totalorder 2, %s9
      // Predicated region
      $region63: #{_forward.1} parent=5 // pred_check
        %p491 = pneg %p490
      $region64: #{_forward.1} parent=5 // pred_check_branch
        %493 = sbr.rel (%p491) target = $region66
      $region65: #{_forward.1} parent=5 // pred_region
        %s494 = ssub.s32 %s9, 2
        // Predicated region
        $region67: #{_forward.1} parent=65 // pred_check
          %p495 = pneg %p85
        $region68: #{_forward.1} parent=65 // pred_check_branch
          %497 = sbr.rel (%p495) target = $region70
        $region69: #{_forward.1} parent=65 // pred_region
          %s498 = sand.u32 %s70, 1
          %s499 = sand.u32 %s70, 1
          %s500 = smul.addr %s499, 64
          %s501 = scalar_lea.vmem [#allocation4], %s500
        $region70: #{_forward.1} parent=65 // pred_fallthru
          _
      $region66: #{_forward.1} parent=5 // pred_fallthru
        _
    $region6: #{_forward.1} parent=1 // loop_footer
      %s13 = sadd.s32 1, %s9
    $region7: #{_forward.1} parent=1 // loop_footer_branch
      %8 = sbr.rel target = $region3
    $region8: #{_forward.1} parent=1 // loop_exit
      _
    %502 = vsyncpa [#allocation3], 1
    %s503 = scalar_lea.sflag [#allocation3], 1
    %504 = vsyncpa %s503, 1

</llo_original>
